<compile_context>
chip_gen: v6e
topology: v6e:2x2x1
jax: 0.10.0
libtpu: 0.0.40
codegen_flags: <defaults>
</compile_context>

<pallas_src>
import functools

import jax
import jax.numpy as jnp
from jax.experimental import pallas as pl
from jax.experimental.pallas import tpu as pltpu


def _dwconv1d_kernel(x_ref, w_ref, b_ref, o_ref, *, k, L, m):
    """One batch tile of grouped 'same' conv1d.

    x_ref: (TB, ic, L + k - 1)  padded input tile
    w_ref: (m, k, ic, 1)        w_ref[r, j, g, 0] = weight[g*m + r, 0, j]
    b_ref: (m, ic, 1)           b_ref[r, g, 0]    = bias[g*m + r]
    o_ref: (TB, m, ic, L)       o_ref[b, r, g, :] = out channel (g*m + r)
    """
    x = x_ref[...].astype(jnp.float32)            # (TB, ic, Lp)
    # Hoist the k shifted views once; they are shared by all m sub-channels.
    xs = [x[:, :, j:j + L] for j in range(k)]     # each (TB, ic, L)
    for r in range(m):                            # m, k are small & static -> unrolled
        acc = xs[0] * w_ref[r, 0].astype(jnp.float32)        # (ic,1) bcast over (TB,.,L)
        for j in range(1, k):
            acc = acc + xs[j] * w_ref[r, j].astype(jnp.float32)
        acc = acc + b_ref[r].astype(jnp.float32)
        o_ref[:, r, :, :] = acc.astype(o_ref.dtype)           # full lane-dense store


def conv1d_grouped_same(x, weight, bias, *, block_b=8):
    """Forward of nn.Conv1d(ic, oc, k, stride=1, padding='same', groups=ic).

    x: (B, ic, L); weight: (oc, 1, k) (PyTorch layout for groups=ic); bias: (oc,)
    returns: (B, oc, L)
    """
    B, ic, L = x.shape
    oc, _, k = weight.shape
    assert oc % ic == 0, "groups=ic requires oc to be a multiple of ic"
    m = oc // ic

    # 'same' padding, PyTorch convention (extra pad goes on the right).
    left = (k - 1) // 2
    right = (k - 1) - left
    xp = jnp.pad(x, ((0, 0), (0, 0), (left, right)))
    Lp = L + k - 1

    # Batch tiling: amortizes per-grid-step overhead and gives a "parallel"
    # axis for megacore sharding on v7x.
    TB = min(block_b, B)
    n_tiles = -(-B // TB)
    Bp = n_tiles * TB
    if Bp != B:
        xp = jnp.pad(xp, ((0, Bp - B), (0, 0), (0, 0)))

    # Group-major weight / bias so every in-kernel slice is a whole (ic, 1) tile.
    w4 = weight.reshape(ic, m, k).transpose(1, 2, 0)[..., None]   # (m, k, ic, 1)
    b3 = bias.reshape(ic, m).transpose(1, 0)[..., None]           # (m, ic, 1)

    out4 = pl.pallas_call(
        functools.partial(_dwconv1d_kernel, k=k, L=L, m=m),
        out_shape=jax.ShapeDtypeStruct((Bp, m, ic, L), x.dtype),
        grid_spec=pltpu.PrefetchScalarGridSpec(
            num_scalar_prefetch=0,
            grid=(n_tiles,),
            in_specs=[
                pl.BlockSpec((TB, ic, Lp), lambda i: (i, 0, 0)),
                pl.BlockSpec((m, k, ic, 1), lambda i: (0, 0, 0, 0)),
                pl.BlockSpec((m, ic, 1), lambda i: (0, 0, 0)),
            ],
            out_specs=pl.BlockSpec((TB, m, ic, L), lambda i: (i, 0, 0, 0)),
        ),
        compiler_params=pltpu.CompilerParams(
            dimension_semantics=("parallel",),
        ),
    )(xp, w4, b3)

    # (Bp, m, ic, L) -> (Bp, ic, m, L) -> (Bp, oc, L); PyTorch channel order is
    # o = g*m + r (group g = input channel, r = sub-channel within the group).
    out = out4.transpose(0, 2, 1, 3).reshape(Bp, oc, L)
    return out[:B] if Bp != B else out


if __name__ == "__main__":
    # Small shapes consistent with the module: (batch, channels, seq).
    B, IC, OC, K, L = 4, 4, 8, 3, 128   # groups=IC -> each group has OC//IC = 2 outputs

    key = jax.random.PRNGKey(0)
    kx, kw, kb = jax.random.split(key, 3)
    x = jax.random.normal(kx, (B, IC, L), dtype=jnp.float32)
    # nn.Conv1d default init range: uniform(-1/sqrt(fan_in)); fan_in = (ic/groups)*k = k.
    bound = 1.0 / (K ** 0.5)
    w = jax.random.uniform(kw, (OC, 1, K), minval=-bound, maxval=bound, dtype=jnp.float32)
    b = jax.random.uniform(kb, (OC,), minval=-bound, maxval=bound, dtype=jnp.float32)

    out = conv1d_grouped_same(x, w, b)
    jax.block_until_ready(out)
    assert out.shape == (B, OC, L)

    # Pure-JAX reference: grouped cross-correlation with PyTorch 'same' padding.
    m = OC // IC
    left = (K - 1) // 2
    xp = jnp.pad(x, ((0, 0), (0, 0), (left, (K - 1) - left)))
    xe = jnp.repeat(xp, m, axis=1)                # output channel o reads input o // m
    ref = jnp.zeros((B, OC, L), jnp.float32)
    for j in range(K):
        ref = ref + xe[:, :, j:j + L] * w[:, 0, j][None, :, None]
    ref = ref + b[None, :, None]

    assert jnp.allclose(out, ref, atol=1e-5, rtol=1e-5), float(jnp.max(jnp.abs(out - ref)))
    print("KERNEL_OK")
</pallas_src>

<mosaic_0001>
module attributes {stable_mosaic.version = 11 : i64} {
  func.func @_dwconv1d_kernel(%arg0: i32, %arg1: memref<4x4x130xf32, #tpu.memory_space<vmem>>, %arg2: memref<2x3x4x1xf32, #tpu.memory_space<vmem>>, %arg3: memref<2x4x1xf32, #tpu.memory_space<vmem>>, %arg4: memref<4x2x4x128xf32, #tpu.memory_space<vmem>>) attributes {dimension_semantics = [#tpu.dimension_semantics<parallel>], iteration_bounds = array<i64: 1>, scalar_prefetch = 0 : i64, scratch_operands = 0 : i64, tpu.core_type = #tpu.core_type<tc>, window_params = [{transform_indices = @transform_0, window_bounds = array<i64: 4, 4, 130>}, {pipeline_mode = #tpu.pipeline_mode<synchronous>, transform_indices = @transform_1, window_bounds = array<i64: 2, 3, 4, 1>}, {pipeline_mode = #tpu.pipeline_mode<synchronous>, transform_indices = @transform_2, window_bounds = array<i64: 2, 4, 1>}, {transform_indices = @transform_3, window_bounds = array<i64: 4, 2, 4, 128>}]} {
    %c0 = arith.constant 0 : index
    %c0_0 = arith.constant 0 : index
    %c0_1 = arith.constant 0 : index
    %0 = vector.load %arg1[%c0, %c0_0, %c0_1] : memref<4x4x130xf32, #tpu.memory_space<vmem>>, vector<4x4x130xf32>
    %1 = vector.extract_strided_slice %0 {offsets = [0, 0, 0], sizes = [4, 4, 128], strides = [1, 1, 1]} : vector<4x4x130xf32> to vector<4x4x128xf32>
    %2 = vector.extract_strided_slice %0 {offsets = [0, 0, 1], sizes = [4, 4, 128], strides = [1, 1, 1]} : vector<4x4x130xf32> to vector<4x4x128xf32>
    %3 = vector.extract_strided_slice %0 {offsets = [0, 0, 2], sizes = [4, 4, 128], strides = [1, 1, 1]} : vector<4x4x130xf32> to vector<4x4x128xf32>
    %c0_2 = arith.constant 0 : index
    %c0_3 = arith.constant 0 : index
    %c0_4 = arith.constant 0 : index
    %c0_5 = arith.constant 0 : index
    %4 = vector.load %arg2[%c0_2, %c0_3, %c0_4, %c0_5] : memref<2x3x4x1xf32, #tpu.memory_space<vmem>>, vector<1x1x4x1xf32>
    %5 = vector.shape_cast %4 : vector<1x1x4x1xf32> to vector<4x1xf32>
    %6 = vector.shape_cast %5 : vector<4x1xf32> to vector<1x4x1xf32>
    %7 = vector.broadcast %6 : vector<1x4x1xf32> to vector<4x4x128xf32>
    %8 = arith.mulf %1, %7 : vector<4x4x128xf32>
    %c0_6 = arith.constant 0 : index
    %c1 = arith.constant 1 : index
    %c0_7 = arith.constant 0 : index
    %c0_8 = arith.constant 0 : index
    %9 = vector.load %arg2[%c0_6, %c1, %c0_7, %c0_8] : memref<2x3x4x1xf32, #tpu.memory_space<vmem>>, vector<1x1x4x1xf32>
    %10 = vector.shape_cast %9 : vector<1x1x4x1xf32> to vector<4x1xf32>
    %11 = vector.shape_cast %10 : vector<4x1xf32> to vector<1x4x1xf32>
    %12 = vector.broadcast %11 : vector<1x4x1xf32> to vector<4x4x128xf32>
    %13 = arith.mulf %2, %12 : vector<4x4x128xf32>
    %14 = arith.addf %8, %13 : vector<4x4x128xf32>
    %c0_9 = arith.constant 0 : index
    %c2 = arith.constant 2 : index
    %c0_10 = arith.constant 0 : index
    %c0_11 = arith.constant 0 : index
    %15 = vector.load %arg2[%c0_9, %c2, %c0_10, %c0_11] : memref<2x3x4x1xf32, #tpu.memory_space<vmem>>, vector<1x1x4x1xf32>
    %16 = vector.shape_cast %15 : vector<1x1x4x1xf32> to vector<4x1xf32>
    %17 = vector.shape_cast %16 : vector<4x1xf32> to vector<1x4x1xf32>
    %18 = vector.broadcast %17 : vector<1x4x1xf32> to vector<4x4x128xf32>
    %19 = arith.mulf %3, %18 : vector<4x4x128xf32>
    %20 = arith.addf %14, %19 : vector<4x4x128xf32>
    %c0_12 = arith.constant 0 : index
    %c0_13 = arith.constant 0 : index
    %c0_14 = arith.constant 0 : index
    %21 = vector.load %arg3[%c0_12, %c0_13, %c0_14] : memref<2x4x1xf32, #tpu.memory_space<vmem>>, vector<1x4x1xf32>
    %22 = vector.shape_cast %21 : vector<1x4x1xf32> to vector<4x1xf32>
    %23 = vector.shape_cast %22 : vector<4x1xf32> to vector<1x4x1xf32>
    %24 = vector.broadcast %23 : vector<1x4x1xf32> to vector<4x4x128xf32>
    %25 = arith.addf %20, %24 : vector<4x4x128xf32>
    %c0_15 = arith.constant 0 : index
    %c0_16 = arith.constant 0 : index
    %c0_17 = arith.constant 0 : index
    %c0_18 = arith.constant 0 : index
    %26 = vector.load %arg4[%c0_15, %c0_16, %c0_17, %c0_18] : memref<4x2x4x128xf32, #tpu.memory_space<vmem>>, vector<4x1x4x128xf32>
    %27 = vector.shape_cast %26 : vector<4x1x4x128xf32> to vector<4x4x128xf32>
    %28 = vector.shape_cast %25 : vector<4x4x128xf32> to vector<4x1x4x128xf32>
    tpu.vector_store %arg4[%c0_15, %c0_16, %c0_17, %c0_18], %28 {strides = array<i32>} : memref<4x2x4x128xf32, #tpu.memory_space<vmem>>, vector<4x1x4x128xf32>,
    %c1_19 = arith.constant 1 : index
    %c0_20 = arith.constant 0 : index
    %c0_21 = arith.constant 0 : index
    %c0_22 = arith.constant 0 : index
    %29 = vector.load %arg2[%c1_19, %c0_20, %c0_21, %c0_22] : memref<2x3x4x1xf32, #tpu.memory_space<vmem>>, vector<1x1x4x1xf32>
    %30 = vector.shape_cast %29 : vector<1x1x4x1xf32> to vector<4x1xf32>
    %31 = vector.shape_cast %30 : vector<4x1xf32> to vector<1x4x1xf32>
    %32 = vector.broadcast %31 : vector<1x4x1xf32> to vector<4x4x128xf32>
    %33 = arith.mulf %1, %32 : vector<4x4x128xf32>
    %c1_23 = arith.constant 1 : index
    %c1_24 = arith.constant 1 : index
    %c0_25 = arith.constant 0 : index
    %c0_26 = arith.constant 0 : index
    %34 = vector.load %arg2[%c1_23, %c1_24, %c0_25, %c0_26] : memref<2x3x4x1xf32, #tpu.memory_space<vmem>>, vector<1x1x4x1xf32>
    %35 = vector.shape_cast %34 : vector<1x1x4x1xf32> to vector<4x1xf32>
    %36 = vector.shape_cast %35 : vector<4x1xf32> to vector<1x4x1xf32>
    %37 = vector.broadcast %36 : vector<1x4x1xf32> to vector<4x4x128xf32>
    %38 = arith.mulf %2, %37 : vector<4x4x128xf32>
    %39 = arith.addf %33, %38 : vector<4x4x128xf32>
    %c1_27 = arith.constant 1 : index
    %c2_28 = arith.constant 2 : index
    %c0_29 = arith.constant 0 : index
    %c0_30 = arith.constant 0 : index
    %40 = vector.load %arg2[%c1_27, %c2_28, %c0_29, %c0_30] : memref<2x3x4x1xf32, #tpu.memory_space<vmem>>, vector<1x1x4x1xf32>
    %41 = vector.shape_cast %40 : vector<1x1x4x1xf32> to vector<4x1xf32>
    %42 = vector.shape_cast %41 : vector<4x1xf32> to vector<1x4x1xf32>
    %43 = vector.broadcast %42 : vector<1x4x1xf32> to vector<4x4x128xf32>
    %44 = arith.mulf %3, %43 : vector<4x4x128xf32>
    %45 = arith.addf %39, %44 : vector<4x4x128xf32>
    %c1_31 = arith.constant 1 : index
    %c0_32 = arith.constant 0 : index
    %c0_33 = arith.constant 0 : index
    %46 = vector.load %arg3[%c1_31, %c0_32, %c0_33] : memref<2x4x1xf32, #tpu.memory_space<vmem>>, vector<1x4x1xf32>
    %47 = vector.shape_cast %46 : vector<1x4x1xf32> to vector<4x1xf32>
    %48 = vector.shape_cast %47 : vector<4x1xf32> to vector<1x4x1xf32>
    %49 = vector.broadcast %48 : vector<1x4x1xf32> to vector<4x4x128xf32>
    %50 = arith.addf %45, %49 : vector<4x4x128xf32>
    %c0_34 = arith.constant 0 : index
    %c1_35 = arith.constant 1 : index
    %c0_36 = arith.constant 0 : index
    %c0_37 = arith.constant 0 : index
    %51 = vector.load %arg4[%c0_34, %c1_35, %c0_36, %c0_37] : memref<4x2x4x128xf32, #tpu.memory_space<vmem>>, vector<4x1x4x128xf32>
    %52 = vector.shape_cast %51 : vector<4x1x4x128xf32> to vector<4x4x128xf32>
    %53 = vector.shape_cast %50 : vector<4x4x128xf32> to vector<4x1x4x128xf32>
    tpu.vector_store %arg4[%c0_34, %c1_35, %c0_36, %c0_37], %53 {strides = array<i32>} : memref<4x2x4x128xf32, #tpu.memory_space<vmem>>, vector<4x1x4x128xf32>,
    return
  }
  func.func @transform_0(%arg0: i32) -> (i32, i32, i32) {
    %c0_i32 = arith.constant 0 : i32
    %c0_i32_0 = arith.constant 0 : i32
    %c0_i32_1 = arith.constant 0 : i32
    return %arg0, %c0_i32, %c0_i32_0 : i32, i32, i32
  }
  func.func @transform_1(%arg0: i32) -> (i32, i32, i32, i32) {
    %c0_i32 = arith.constant 0 : i32
    %c0_i32_0 = arith.constant 0 : i32
    %c0_i32_1 = arith.constant 0 : i32
    %c0_i32_2 = arith.constant 0 : i32
    %c0_i32_3 = arith.constant 0 : i32
    return %c0_i32, %c0_i32_0, %c0_i32_1, %c0_i32_2 : i32, i32, i32, i32
  }
  func.func @transform_2(%arg0: i32) -> (i32, i32, i32) {
    %c0_i32 = arith.constant 0 : i32
    %c0_i32_0 = arith.constant 0 : i32
    %c0_i32_1 = arith.constant 0 : i32
    %c0_i32_2 = arith.constant 0 : i32
    return %c0_i32, %c0_i32_0, %c0_i32_1 : i32, i32, i32
  }
  func.func @transform_3(%arg0: i32) -> (i32, i32, i32, i32) {
    %c0_i32 = arith.constant 0 : i32
    %c0_i32_0 = arith.constant 0 : i32
    %c0_i32_1 = arith.constant 0 : i32
    %c0_i32_2 = arith.constant 0 : i32
    return %arg0, %c0_i32, %c0_i32_0, %c0_i32_1 : i32, i32, i32, i32
  }
}

</mosaic_0001>

<llo_original>
// kernel: tpu_custom_call.1
$region0: #{tpu_custom_call.1}
  #allocation0 [shape = 'u32[]', space=smem, size = 0x4, offset = 0x4, fixed_abs, tag = 'smem constant byte address 0x4 - core index']
  #allocation1 [shape = 'u32[144,128]{1,0:T(1,128)}', space=vmem, size = 0x12000, scoped, tag = 'internal scratch']
  %s0 = inlined_call_operand.vmem [shape: f32[4,4,130], index: 0, kind: input, shape index: {}]
  %s1 = inlined_call_operand.vmem [shape: f32[2,3,4,1], index: 1, kind: input, shape index: {}]
  %s2 = inlined_call_operand.vmem [shape: f32[2,4,1], index: 2, kind: input, shape index: {}]
  %s3 = inlined_call_operand.hbm [shape: f32[4,2,4,128], index: 3, kind: output, shape index: {}]
  %s4 = sld [smem:[#allocation0]]
  $region22: #{tpu_custom_call.1} parent=0
    _
  %s6 = ssub.s32 1, %s4
  %s7 = scalar_select 0, %s6, %s4
  $region1: #{tpu_custom_call.1} parent=0
    #allocation2 [shape = 'u8[16384]{0}', space=vmem, size = 0x4000, scoped, tag = 'output window, operand 0, single buffered']
    #allocation3 [shape = 's32[1]{0}', space=sflag, size = 0x4, scoped, tag = 'scoped memory for tpu_custom_call.1']
    %8 = vsyncpa [#allocation3], 0
    // Predicated region
    $region2: #{tpu_custom_call.1} parent=1 // pred_check
      _
    $region3: #{tpu_custom_call.1} parent=1 // pred_check_branch
      %10 = sbr.rel (0) target = $region5
    $region4: #{tpu_custom_call.1} parent=1 // pred_region
      _
    $region5: #{tpu_custom_call.1} parent=1 // pred_fallthru
      _
    // Predicated region
    $region6: #{tpu_custom_call.1} parent=1 // pred_check
      _
    $region7: #{tpu_custom_call.1} parent=1 // pred_check_branch
      %12 = sbr.rel (0) target = $region9
    $region8: #{tpu_custom_call.1} parent=1 // pred_region
      _
    $region9: #{tpu_custom_call.1} parent=1 // pred_fallthru
      _
    // Predicated region
    $region10: #{tpu_custom_call.1} parent=1 // pred_check
      _
    $region11: #{tpu_custom_call.1} parent=1 // pred_check_branch
      %14 = sbr.rel (0) target = $region13
    $region12: #{tpu_custom_call.1} parent=1 // pred_region
      _
    $region13: #{tpu_custom_call.1} parent=1 // pred_fallthru
      _
    %v15 = vld [vmem:[%s0] sm:$0xff]
    %v16 = vld [vmem:[%s0 + $0x8] sm:$0xff]
    %v17 = vld [vmem:[%s0 + $0x10] sm:$0xff]
    %v18 = vld [vmem:[%s0 + $0x18] sm:$0xff]
    %v19 = vld [vmem:[%s1] sm:$0xf]
    %21 = vset.pattern.permute.xlu0 0
    %22 = vperm.xlu0 %21, %v19
    %v23 = vpop.permute.xlu0 %22
    %v25 = vmul.f32 %v15, %v23
    %v26 = vmul.f32 %v16, %v23
    %v27 = vmul.f32 %v17, %v23
    %v28 = vmul.f32 %v18, %v23
    %s29 = scalar_lea.vmem %s1, 4
    %v30 = vld [vmem:[%s29] sm:$0xf]
    %32 = vset.pattern.permute.xlu0 0
    %33 = vperm.xlu0 %32, %v30
    %v34 = vpop.permute.xlu0 %33
    %v36 = vmul.f32 %v15, %v34
    %v37 = vmul.f32 %v16, %v34
    %v38 = vmul.f32 %v17, %v34
    %v39 = vmul.f32 %v18, %v34
    %44 = vrot.lane.b32.xlu0 %v36, 127
    %v45 = vpop.permute.xlu0 %44
    %46 = vrot.lane.b32.xlu0 %v37, 127
    %v47 = vpop.permute.xlu0 %46
    %48 = vrot.lane.b32.xlu0 %v38, 127
    %v49 = vpop.permute.xlu0 %48
    %50 = vrot.lane.b32.xlu0 %v39, 127
    %v51 = vpop.permute.xlu0 %50
    %v52 = vrot.slane %v45, 4
    %v53 = vrot.slane %v47, 4
    %v54 = vrot.slane %v49, 4
    %v55 = vrot.slane %v51, 4
    %vm56 = vcmask 1039360
    %v57 = vsel %vm56, %v45, %v52
    %v58 = vsel %vm56, %v47, %v53
    %v59 = vsel %vm56, %v49, %v54
    %v60 = vsel %vm56, %v51, %v55
    %v65 = vadd.f32 %v25, %v57
    %v66 = vadd.f32 %v26, %v58
    %v67 = vadd.f32 %v27, %v59
    %v68 = vadd.f32 %v28, %v60
    %s69 = scalar_lea.vmem %s1, 8
    %v70 = vld [vmem:[%s69] sm:$0xf]
    %72 = vset.pattern.permute.xlu0 0
    %73 = vperm.xlu0 %72, %v70
    %v74 = vpop.permute.xlu0 %73
    %v76 = vmul.f32 %v15, %v74
    %v77 = vmul.f32 %v16, %v74
    %v78 = vmul.f32 %v17, %v74
    %v79 = vmul.f32 %v18, %v74
    %84 = vrot.lane.b32.xlu0 %v76, 126
    %v85 = vpop.permute.xlu0 %84
    %86 = vrot.lane.b32.xlu0 %v77, 126
    %v87 = vpop.permute.xlu0 %86
    %88 = vrot.lane.b32.xlu0 %v78, 126
    %v89 = vpop.permute.xlu0 %88
    %90 = vrot.lane.b32.xlu0 %v79, 126
    %v91 = vpop.permute.xlu0 %90
    %v92 = vrot.slane %v85, 4
    %v93 = vrot.slane %v87, 4
    %v94 = vrot.slane %v89, 4
    %v95 = vrot.slane %v91, 4
    %vm96 = vcmask 1031168
    %v97 = vsel %vm96, %v85, %v92
    %v98 = vsel %vm96, %v87, %v93
    %v99 = vsel %vm96, %v89, %v94
    %v100 = vsel %vm96, %v91, %v95
    %v105 = vadd.f32 %v65, %v97
    %v106 = vadd.f32 %v66, %v98
    %v107 = vadd.f32 %v67, %v99
    %v108 = vadd.f32 %v68, %v100
    %v109 = vld [vmem:[%s2] sm:$0xf]
    %111 = vset.pattern.permute.xlu0 0
    %112 = vperm.xlu0 %111, %v109
    %v113 = vpop.permute.xlu0 %112
    %v115 = vadd.f32 %v105, %v113
    %v116 = vadd.f32 %v106, %v113
    %v117 = vadd.f32 %v107, %v113
    %v118 = vadd.f32 %v108, %v113
    %119 = vst [vmem:[#allocation2] sm:$0xf] %v115
    %120 = vst [vmem:[#allocation2 + $0x8] sm:$0xf] %v116
    %121 = vst [vmem:[#allocation2 + $0x10] sm:$0xf] %v117
    %122 = vst [vmem:[#allocation2 + $0x18] sm:$0xf] %v118
    %s123 = scalar_lea.vmem %s1, 12
    %v124 = vld [vmem:[%s123] sm:$0xf]
    %126 = vset.pattern.permute.xlu0 0
    %127 = vperm.xlu0 %126, %v124
    %v128 = vpop.permute.xlu0 %127
    %v130 = vmul.f32 %v15, %v128
    %v131 = vmul.f32 %v16, %v128
    %v132 = vmul.f32 %v17, %v128
    %v133 = vmul.f32 %v18, %v128
    %s134 = scalar_lea.vmem %s1, 16
    %v135 = vld [vmem:[%s134] sm:$0xf]
    %137 = vset.pattern.permute.xlu0 0
    %138 = vperm.xlu0 %137, %v135
    %v139 = vpop.permute.xlu0 %138
    %v141 = vmul.f32 %v15, %v139
    %v142 = vmul.f32 %v16, %v139
    %v143 = vmul.f32 %v17, %v139
    %v144 = vmul.f32 %v18, %v139
    %149 = vrot.lane.b32.xlu0 %v141, 127
    %v150 = vpop.permute.xlu0 %149
    %151 = vrot.lane.b32.xlu0 %v142, 127
    %v152 = vpop.permute.xlu0 %151
    %153 = vrot.lane.b32.xlu0 %v143, 127
    %v154 = vpop.permute.xlu0 %153
    %155 = vrot.lane.b32.xlu0 %v144, 127
    %v156 = vpop.permute.xlu0 %155
    %v157 = vrot.slane %v150, 4
    %v158 = vrot.slane %v152, 4
    %v159 = vrot.slane %v154, 4
    %v160 = vrot.slane %v156, 4
    %v161 = vsel %vm56, %v150, %v157
    %v162 = vsel %vm56, %v152, %v158
    %v163 = vsel %vm56, %v154, %v159
    %v164 = vsel %vm56, %v156, %v160
    %v169 = vadd.f32 %v130, %v161
    %v170 = vadd.f32 %v131, %v162
    %v171 = vadd.f32 %v132, %v163
    %v172 = vadd.f32 %v133, %v164
    %s173 = scalar_lea.vmem %s1, 20
    %v174 = vld [vmem:[%s173] sm:$0xf]
    %176 = vset.pattern.permute.xlu0 0
    %177 = vperm.xlu0 %176, %v174
    %v178 = vpop.permute.xlu0 %177
    %v180 = vmul.f32 %v15, %v178
    %v181 = vmul.f32 %v16, %v178
    %v182 = vmul.f32 %v17, %v178
    %v183 = vmul.f32 %v18, %v178
    %188 = vrot.lane.b32.xlu0 %v180, 126
    %v189 = vpop.permute.xlu0 %188
    %190 = vrot.lane.b32.xlu0 %v181, 126
    %v191 = vpop.permute.xlu0 %190
    %192 = vrot.lane.b32.xlu0 %v182, 126
    %v193 = vpop.permute.xlu0 %192
    %194 = vrot.lane.b32.xlu0 %v183, 126
    %v195 = vpop.permute.xlu0 %194
    %v196 = vrot.slane %v189, 4
    %v197 = vrot.slane %v191, 4
    %v198 = vrot.slane %v193, 4
    %v199 = vrot.slane %v195, 4
    %v200 = vsel %vm96, %v189, %v196
    %v201 = vsel %vm96, %v191, %v197
    %v202 = vsel %vm96, %v193, %v198
    %v203 = vsel %vm96, %v195, %v199
    %v208 = vadd.f32 %v169, %v200
    %v209 = vadd.f32 %v170, %v201
    %v210 = vadd.f32 %v171, %v202
    %v211 = vadd.f32 %v172, %v203
    %s212 = scalar_lea.vmem %s2, 4
    %v213 = vld [vmem:[%s212] sm:$0xf]
    %215 = vset.pattern.permute.xlu0 0
    %216 = vperm.xlu0 %215, %v213
    %v217 = vpop.permute.xlu0 %216
    %v219 = vadd.f32 %v208, %v217
    %v220 = vadd.f32 %v209, %v217
    %v221 = vadd.f32 %v210, %v217
    %v222 = vadd.f32 %v211, %v217
    %s223 = scalar_lea.vmem [#allocation2], 4
    %224 = vst [vmem:[%s223] sm:$0xf] %v219
    %225 = vst [vmem:[%s223 + $0x8] sm:$0xf] %v220
    %226 = vst [vmem:[%s223 + $0x10] sm:$0xf] %v221
    %227 = vst [vmem:[%s223 + $0x18] sm:$0xf] %v222
    // Predicated region
    $region14: #{tpu_custom_call.1} parent=1 // pred_check
      _
    $region15: #{tpu_custom_call.1} parent=1 // pred_check_branch
      %229 = sbr.rel (0) target = $region17
    $region16: #{tpu_custom_call.1} parent=1 // pred_region
      %s231 = ssub.s32 512, 512
      %232 = vsyncadd [#allocation3], %s231
      %s233 = sshll.u32 [#allocation2], 4
      %s234 = int_to_ptr.vmem [resolvable:$true] %s233
      %239 = dma.vmem_to_hbm [thread:$0]  %s234, 512, %s3, [#allocation3], 64, 64, 4
    $region17: #{tpu_custom_call.1} parent=1 // pred_fallthru
      _
    // Predicated region
    $region18: #{tpu_custom_call.1} parent=1 // pred_check
      _
    $region19: #{tpu_custom_call.1} parent=1 // pred_check_branch
      %241 = sbr.rel (0) target = $region21
    $region20: #{tpu_custom_call.1} parent=1 // pred_region
      %242 = dma.done [#allocation3], 512
    $region21: #{tpu_custom_call.1} parent=1 // pred_fallthru
      _
    %243 = vsyncpa [#allocation3], 1

</llo_original>
